<compile_context>
chip_gen: v6e
topology: v6e:2x2x1
jax: 0.10.0
libtpu: 0.0.40
codegen_flags: <defaults>
</compile_context>

<pallas_src>
import jax
import jax.numpy as jnp
import numpy as np
from jax import lax
from jax.experimental import pallas as pl
from jax.experimental.pallas import tpu as pltpu

LANE = 128
MAX_TILE_B = 2048


def _round_up(x, m):
    return ((x + m - 1) // m) * m


def dpr_kernel(u_ref, i_ref,        # (1, TILE_B) int32 index rows (VMEM)
               ut_ref, it_ref,      # (nu_pad, R) / (ni_pad, R) tables (row-padded)
               w_ref, b_ref,        # fused heads: (2, R) weights, (2, 1) bias
               out_ref):            # packed output block (3, TILE_B)
    nu = ut_ref.shape[0]
    ni = it_ref.shape[0]
    tb = u_ref.shape[1]

    # One-hot gather built from an iota compare against the lane-major index row.
    onehot_u = (lax.broadcasted_iota(jnp.int32, (nu, tb), 0)
                == u_ref[...]).astype(jnp.float32)                 # (nu, TILE_B)
    onehot_i = (lax.broadcasted_iota(jnp.int32, (ni, tb), 0)
                == i_ref[...]).astype(jnp.float32)                 # (ni, TILE_B)

    # Contract the table's row axis directly on the MXU (no transposed copy):
    # (nu, R) x (nu, TILE_B) -> (R, TILE_B).
    dn = (((0,), (0,)), ((), ()))
    u_emb_t = lax.dot_general(ut_ref[...], onehot_u, dimension_numbers=dn,
                              preferred_element_type=jnp.float32)
    i_emb_t = lax.dot_general(it_ref[...], onehot_i, dimension_numbers=dn,
                              preferred_element_type=jnp.float32)

    inter_t = u_emb_t * i_emb_t                                    # (R, TILE_B)

    # Fused mean/logvar heads: (2, R) @ (R, TILE_B) + (2, 1) -> (2, TILE_B).
    heads = jnp.dot(w_ref[...], inter_t,
                    preferred_element_type=jnp.float32) + b_ref[...]

    mean_row = heads[0:1, :]
    logvar_row = heads[1:2, :]
    std_row = jnp.exp(0.5 * logvar_row)

    # Single packed, lane-dense store: rows = [mean, std, logvar].
    out_ref[...] = jnp.concatenate([mean_row, std_row, logvar_row], axis=0)


def prepare_params(params):
    """One-time parameter plumbing (hoisted out of the per-call forward path)."""
    user_table = params["user_embedding"].astype(jnp.float32)     # (num_users, R)
    item_table = params["item_embedding"].astype(jnp.float32)     # (num_items, R)
    wm, bm = params["fc_mean_w"], params["fc_mean_b"]              # (1, R), (1, 1)
    wv, bv = params["fc_logvar_w"], params["fc_logvar_b"]          # (1, R), (1, 1)

    nu, R = user_table.shape
    ni, _ = item_table.shape

    # Zero-pad rows to a lane-aligned count; padded rows are never selected by
    # the one-hot, so numerics are unchanged.
    nu_pad = _round_up(nu, LANE)
    ni_pad = _round_up(ni, LANE)
    user_table_p = jnp.zeros((nu_pad, R), jnp.float32).at[:nu].set(user_table)
    item_table_p = jnp.zeros((ni_pad, R), jnp.float32).at[:ni].set(item_table)

    w2 = jnp.concatenate([wm.reshape(1, R), wv.reshape(1, R)], axis=0).astype(jnp.float32)
    b2 = jnp.concatenate([bm.reshape(1, 1), bv.reshape(1, 1)], axis=0).astype(jnp.float32)

    return {"user_table": user_table_p, "item_table": item_table_p,
            "w2": w2, "b2": b2}


def dpr_forward(users, items, prep):
    ut, it = prep["user_table"], prep["item_table"]
    w2, b2 = prep["w2"], prep["b2"]
    nu_pad, R = ut.shape
    ni_pad, _ = it.shape
    B = users.shape[0]

    # Fat batch tiles; always >=2 tiles so v7x's two TensorCores both get work.
    b_pad = _round_up(max(B, 2 * LANE), 2 * LANE)
    tile_b = min(MAX_TILE_B, b_pad // 2)       # multiple of 128 by construction
    b_pad = _round_up(b_pad, tile_b)
    num_tiles = b_pad // tile_b

    u_row = jnp.zeros((1, b_pad), jnp.int32).at[0, :B].set(users.astype(jnp.int32))
    i_row = jnp.zeros((1, b_pad), jnp.int32).at[0, :B].set(items.astype(jnp.int32))

    cost = pl.CostEstimate(
        flops=2 * b_pad * R * (nu_pad + ni_pad + 2) + 4 * b_pad * R,
        transcendentals=b_pad,
        bytes_accessed=(2 * 4 * b_pad                      # index rows
                        + 4 * (nu_pad + ni_pad) * R        # tables
                        + 4 * 2 * (R + 1)                  # fused heads
                        + 4 * 3 * b_pad))                  # packed output

    grid_spec = pltpu.PrefetchScalarGridSpec(
        num_scalar_prefetch=0,
        grid=(num_tiles,),
        in_specs=[
            pl.BlockSpec((1, tile_b), lambda g: (0, g)),    # user index row
            pl.BlockSpec((1, tile_b), lambda g: (0, g)),    # item index row
            pl.BlockSpec((nu_pad, R), lambda g: (0, 0)),    # user table (resident)
            pl.BlockSpec((ni_pad, R), lambda g: (0, 0)),    # item table (resident)
            pl.BlockSpec((2, R), lambda g: (0, 0)),         # fused head weights
            pl.BlockSpec((2, 1), lambda g: (0, 0)),         # fused head biases
        ],
        out_specs=pl.BlockSpec((3, tile_b), lambda g: (0, g)),
    )

    out = pl.pallas_call(
        dpr_kernel,
        out_shape=jax.ShapeDtypeStruct((3, b_pad), jnp.float32),
        grid_spec=grid_spec,
        compiler_params=pltpu.CompilerParams(
            dimension_semantics=("parallel",)),             # independent batch tiles
        cost_estimate=cost,
    )(u_row, i_row, ut, it, w2, b2)

    mean = out[0, :B]      # torch .squeeze(): (B,)
    std = out[1, :B]
    logvar = out[2, :B]
    return mean, std, logvar


if __name__ == "__main__":
    num_users, num_items, rank = 50, 64, 32
    B = 256

    key = jax.random.PRNGKey(0)
    k1, k2, k3, k4, k5, k6, k7, k8 = jax.random.split(key, 8)

    # nn.init.normal_(std=0.1) for embeddings; Linear default uniform(+-1/sqrt(rank)).
    user_table = 0.1 * jax.random.normal(k1, (num_users, rank), jnp.float32)
    item_table = 0.1 * jax.random.normal(k2, (num_items, rank), jnp.float32)
    bound = 1.0 / (rank ** 0.5)
    wm = jax.random.uniform(k3, (1, rank), jnp.float32, -bound, bound)
    bm = jax.random.uniform(k4, (1, 1), jnp.float32, -bound, bound)
    wv = jax.random.uniform(k5, (1, rank), jnp.float32, -bound, bound)
    bv = jax.random.uniform(k6, (1, 1), jnp.float32, -bound, bound)

    users = jax.random.randint(k7, (B,), 0, num_users, jnp.int32)
    items = jax.random.randint(k8, (B,), 0, num_items, jnp.int32)

    params = {
        "user_embedding": user_table,
        "item_embedding": item_table,
        "fc_mean_w": wm, "fc_mean_b": bm,
        "fc_logvar_w": wv, "fc_logvar_b": bv,
    }

    prep = prepare_params(params)          # one-time, cached across forward calls
    prep = jax.tree_util.tree_map(jax.block_until_ready, prep)

    mean, std, logvar = dpr_forward(users, items, prep)
    jax.block_until_ready((mean, std, logvar))

    # Pure-JAX reference for correctness.
    u_emb = user_table[users]
    i_emb = item_table[items]
    inter = u_emb * i_emb
    mean_r = inter @ wm[0] + bm[0, 0]
    logvar_r = inter @ wv[0] + bv[0, 0]
    std_r = jnp.exp(0.5 * logvar_r)

    assert np.allclose(np.asarray(mean), np.asarray(mean_r), atol=1e-5), "mean mismatch"
    assert np.allclose(np.asarray(logvar), np.asarray(logvar_r), atol=1e-5), "logvar mismatch"
    assert np.allclose(np.asarray(std), np.asarray(std_r), atol=1e-5), "std mismatch"

    print("KERNEL_OK")
</pallas_src>

<mosaic_0001>
module attributes {stable_mosaic.version = 11 : i64} {
  func.func @dpr_kernel(%arg0: i32, %arg1: memref<1x128xi32, #tpu.memory_space<vmem>>, %arg2: memref<1x128xi32, #tpu.memory_space<vmem>>, %arg3: memref<128x32xf32, #tpu.memory_space<vmem>>, %arg4: memref<128x32xf32, #tpu.memory_space<vmem>>, %arg5: memref<2x32xf32, #tpu.memory_space<vmem>>, %arg6: memref<2x1xf32, #tpu.memory_space<vmem>>, %arg7: memref<3x128xf32, #tpu.memory_space<vmem>>) attributes {dimension_semantics = [#tpu.dimension_semantics<parallel>], iteration_bounds = array<i64: 2>, scalar_prefetch = 0 : i64, scratch_operands = 0 : i64, tpu.core_type = #tpu.core_type<tc>, window_params = [{transform_indices = @transform_0, window_bounds = array<i64: 1, 128>}, {transform_indices = @transform_1, window_bounds = array<i64: 1, 128>}, {pipeline_mode = #tpu.pipeline_mode<synchronous>, transform_indices = @transform_2, window_bounds = array<i64: 128, 32>}, {pipeline_mode = #tpu.pipeline_mode<synchronous>, transform_indices = @transform_3, window_bounds = array<i64: 128, 32>}, {pipeline_mode = #tpu.pipeline_mode<synchronous>, transform_indices = @transform_4, window_bounds = array<i64: 2, 32>}, {pipeline_mode = #tpu.pipeline_mode<synchronous>, transform_indices = @transform_5, window_bounds = array<i64: 2, 1>}, {transform_indices = @transform_6, window_bounds = array<i64: 3, 128>}]} {
    %0 = tpu.iota {dimensions = array<i32: 0>} : vector<128x128xi32>
    %c0 = arith.constant 0 : index
    %c0_0 = arith.constant 0 : index
    %1 = vector.load %arg1[%c0, %c0_0] : memref<1x128xi32, #tpu.memory_space<vmem>>, vector<1x128xi32>
    %2 = vector.broadcast %1 : vector<1x128xi32> to vector<128x128xi32>
    %3 = arith.cmpi eq, %0, %2 : vector<128x128xi32>
    %4 = arith.extui %3 : vector<128x128xi1> to vector<128x128xi32>
    %5 = arith.sitofp %4 : vector<128x128xi32> to vector<128x128xf32>
    %6 = tpu.iota {dimensions = array<i32: 0>} : vector<128x128xi32>
    %c0_1 = arith.constant 0 : index
    %c0_2 = arith.constant 0 : index
    %7 = vector.load %arg2[%c0_1, %c0_2] : memref<1x128xi32, #tpu.memory_space<vmem>>, vector<1x128xi32>
    %8 = vector.broadcast %7 : vector<1x128xi32> to vector<128x128xi32>
    %9 = arith.cmpi eq, %6, %8 : vector<128x128xi32>
    %10 = arith.extui %9 : vector<128x128xi1> to vector<128x128xi32>
    %11 = arith.sitofp %10 : vector<128x128xi32> to vector<128x128xf32>
    %c0_3 = arith.constant 0 : index
    %c0_4 = arith.constant 0 : index
    %12 = vector.load %arg3[%c0_3, %c0_4] : memref<128x32xf32, #tpu.memory_space<vmem>>, vector<128x32xf32>
    %cst = arith.constant dense<0.000000e+00> : vector<32x128xf32>
    %13 = tpu.matmul %12, %5, %cst {dimension_numbers = #tpu.dot_dimension_numbers<[0], [0], [1], [1], [0, 1, 1, 1], [], []>} : vector<128x32xf32>, vector<128x128xf32>, vector<32x128xf32> -> vector<32x128xf32>
    %c0_5 = arith.constant 0 : index
    %c0_6 = arith.constant 0 : index
    %14 = vector.load %arg4[%c0_5, %c0_6] : memref<128x32xf32, #tpu.memory_space<vmem>>, vector<128x32xf32>
    %cst_7 = arith.constant dense<0.000000e+00> : vector<32x128xf32>
    %15 = tpu.matmul %14, %11, %cst_7 {dimension_numbers = #tpu.dot_dimension_numbers<[0], [0], [1], [1], [0, 1, 1, 1], [], []>} : vector<128x32xf32>, vector<128x128xf32>, vector<32x128xf32> -> vector<32x128xf32>
    %16 = arith.mulf %13, %15 : vector<32x128xf32>
    %c0_8 = arith.constant 0 : index
    %c0_9 = arith.constant 0 : index
    %17 = vector.load %arg5[%c0_8, %c0_9] : memref<2x32xf32, #tpu.memory_space<vmem>>, vector<2x32xf32>
    %cst_10 = arith.constant dense<0.000000e+00> : vector<2x128xf32>
    %18 = tpu.matmul %17, %16, %cst_10 {dimension_numbers = #tpu.dot_dimension_numbers<[1], [0], [0], [1], [0, 0, 1, 1], [], []>} : vector<2x32xf32>, vector<32x128xf32>, vector<2x128xf32> -> vector<2x128xf32>
    %c0_11 = arith.constant 0 : index
    %c0_12 = arith.constant 0 : index
    %19 = vector.load %arg6[%c0_11, %c0_12] : memref<2x1xf32, #tpu.memory_space<vmem>>, vector<2x1xf32>
    %20 = vector.broadcast %19 : vector<2x1xf32> to vector<2x128xf32>
    %21 = arith.addf %18, %20 : vector<2x128xf32>
    %22 = vector.extract_strided_slice %21 {offsets = [0, 0], sizes = [1, 128], strides = [1, 1]} : vector<2x128xf32> to vector<1x128xf32>
    %23 = vector.extract_strided_slice %21 {offsets = [1, 0], sizes = [1, 128], strides = [1, 1]} : vector<2x128xf32> to vector<1x128xf32>
    %cst_13 = arith.constant 5.000000e-01 : f32
    %24 = vector.broadcast %cst_13 : f32 to vector<1x128xf32>
    %25 = arith.mulf %24, %23 : vector<1x128xf32>
    %26 = math.exp %25 : vector<1x128xf32>
    %27 = tpu.concatenate %22, %26, %23 in 0 : vector<1x128xf32>, vector<1x128xf32>, vector<1x128xf32> -> vector<3x128xf32>
    %c0_14 = arith.constant 0 : index
    %c0_15 = arith.constant 0 : index
    %28 = vector.load %arg7[%c0_14, %c0_15] : memref<3x128xf32, #tpu.memory_space<vmem>>, vector<3x128xf32>
    tpu.vector_store %arg7[%c0_14, %c0_15], %27 {strides = array<i32>} : memref<3x128xf32, #tpu.memory_space<vmem>>, vector<3x128xf32>,
    return
  }
  func.func @transform_0(%arg0: i32) -> (i32, i32) {
    %c0_i32 = arith.constant 0 : i32
    %c0_i32_0 = arith.constant 0 : i32
    return %c0_i32, %arg0 : i32, i32
  }
  func.func @transform_1(%arg0: i32) -> (i32, i32) {
    %c0_i32 = arith.constant 0 : i32
    %c0_i32_0 = arith.constant 0 : i32
    return %c0_i32, %arg0 : i32, i32
  }
  func.func @transform_2(%arg0: i32) -> (i32, i32) {
    %c0_i32 = arith.constant 0 : i32
    %c0_i32_0 = arith.constant 0 : i32
    %c0_i32_1 = arith.constant 0 : i32
    return %c0_i32, %c0_i32_0 : i32, i32
  }
  func.func @transform_3(%arg0: i32) -> (i32, i32) {
    %c0_i32 = arith.constant 0 : i32
    %c0_i32_0 = arith.constant 0 : i32
    %c0_i32_1 = arith.constant 0 : i32
    return %c0_i32, %c0_i32_0 : i32, i32
  }
  func.func @transform_4(%arg0: i32) -> (i32, i32) {
    %c0_i32 = arith.constant 0 : i32
    %c0_i32_0 = arith.constant 0 : i32
    %c0_i32_1 = arith.constant 0 : i32
    return %c0_i32, %c0_i32_0 : i32, i32
  }
  func.func @transform_5(%arg0: i32) -> (i32, i32) {
    %c0_i32 = arith.constant 0 : i32
    %c0_i32_0 = arith.constant 0 : i32
    %c0_i32_1 = arith.constant 0 : i32
    return %c0_i32, %c0_i32_0 : i32, i32
  }
  func.func @transform_6(%arg0: i32) -> (i32, i32) {
    %c0_i32 = arith.constant 0 : i32
    %c0_i32_0 = arith.constant 0 : i32
    return %c0_i32, %arg0 : i32, i32
  }
}

</mosaic_0001>

<llo_original>
// kernel: tpu_custom_call.1
$region0: #{tpu_custom_call.1}
  #allocation0 [shape = 'u32[]', space=smem, size = 0x4, offset = 0x4, fixed_abs, tag = 'smem constant byte address 0x4 - core index']
  #allocation1 [shape = 'u32[144,128]{1,0:T(1,128)}', space=vmem, size = 0x12000, scoped, tag = 'internal scratch']
  %s0 = inlined_call_operand.vmem [shape: s32[1,256], index: 0, kind: input, shape index: {}]
  %s1 = inlined_call_operand.vmem [shape: s32[1,256], index: 1, kind: input, shape index: {}]
  %s2 = inlined_call_operand.vmem [shape: f32[128,32], index: 2, kind: input, shape index: {}]
  %s3 = inlined_call_operand.vmem [shape: f32[128,32], index: 3, kind: input, shape index: {}]
  %s4 = inlined_call_operand.vmem [shape: f32[2,32], index: 4, kind: input, shape index: {}]
  %s5 = inlined_call_operand.vmem [shape: f32[2,1], index: 5, kind: input, shape index: {}]
  %s6 = inlined_call_operand.hbm [shape: f32[3,256], index: 6, kind: output, shape index: {}]
  %s7 = sld [smem:[#allocation0]]
  $region57: #{tpu_custom_call.1} parent=0
    _
  %s9 = ssub.s32 1, %s7
  %s10 = scalar_select 0, %s9, %s7
  $region1: #{tpu_custom_call.1} parent=0
    #allocation2 [shape = 'u8[4096]{0}', space=vmem, size = 0x1000, scoped, tag = 'output window, operand 0']
    #allocation3 [shape = 's32[2]{0}', space=sflag, size = 0x8, scoped, tag = 'scoped memory for tpu_custom_call.1']
    %11 = vsyncpa [#allocation3], 0
    %s12 = scalar_lea.sflag [#allocation3], 1
    %13 = vsyncpa %s12, 0
    loop: start=0, step=1, limit=4
    $region2: #{tpu_custom_call.1} parent=1 // loop_pre_header
      _
    $region3: #{tpu_custom_call.1} parent=1 // loop_header
      %s15 = sphi 0, %s19
      %p16 = scmp.ge.s32.totalorder %s15, 4
      %s25 = sphi 0, %s27
      %s28 = sphi 0, %s25
      %s29 = sphi 0, %s28
      %s45 = sphi 0, %s29
      %s51 = sphi 0, %s53
      %s54 = sphi 0, %s51
      %s55 = sphi 0, %s54
      %s71 = sphi 0, %s55
      %s75 = sphi 0, %s75
      %s77 = sphi 0, %s75
      %s78 = sphi 0, %s77
      %s92 = sphi 0, %s78
      %s96 = sphi 0, %s96
      %s98 = sphi 0, %s96
      %s99 = sphi 0, %s98
      %s113 = sphi 0, %s99
      %s117 = sphi 0, %s117
      %s119 = sphi 0, %s117
      %s120 = sphi 0, %s119
      %s134 = sphi 0, %s120
      %s138 = sphi 0, %s138
      %s140 = sphi 0, %s138
      %s141 = sphi 0, %s140
      %s155 = sphi 0, %s141
      %s161 = sphi 0, %s163
      %s164 = sphi 0, %s161
      %s165 = sphi 0, %s164
      %s181 = sphi 0, %s165
    $region4: #{tpu_custom_call.1} parent=1 // loop_header_branch
      %18 = sbr.rel (%p16) target = $region8
    $region5: #{tpu_custom_call.1} parent=1 // loop_body
      %s20 = ssub.s32 %s15, 1
      %s21 = ssub.s32 %s15, 2
      %s22 = sadd.s32 %s15, 1
      %s23 = ssub.s32 %s15, %s22
      %p24 = scmp.eq.s32.totalorder %s23, 0
      %s26 = sadd.s32 %s25, 1
      %s27 = scalar_select %p24, %s25, %s26
      %p30 = pneg %p24
      %p31 = scmp.eq.s32.totalorder %s15, 1
      %p32 = por %p30, %p31
      %p33 = scmp.ne.s32.totalorder %s25, %s28
      %p34 = scmp.eq.s32.totalorder %s15, 0
      %p35 = por %p33, %p34
      %p36 = scmp.ne.s32.totalorder %s25, %s28
      %p37 = scmp.eq.s32.totalorder %s20, 1
      %p38 = por %p36, %p37
      %p39 = scmp.ne.s32.totalorder %s28, %s29
      %p40 = scmp.eq.s32.totalorder %s20, 0
      %p41 = por %p39, %p40
      %p42 = scmp.ne.s32.totalorder %s28, %s29
      %p43 = scmp.eq.s32.totalorder %s21, 1
      %p44 = por %p42, %p43
      %p46 = scmp.ne.s32.totalorder %s29, %s45
      %p47 = scmp.eq.s32.totalorder %s21, 0
      %p48 = por %p46, %p47
      %s49 = ssub.s32 %s15, %s22
      %p50 = scmp.eq.s32.totalorder %s49, 0
      %s52 = sadd.s32 %s51, 1
      %s53 = scalar_select %p50, %s51, %s52
      %p56 = pneg %p50
      %p57 = scmp.eq.s32.totalorder %s15, 1
      %p58 = por %p56, %p57
      %p59 = scmp.ne.s32.totalorder %s51, %s54
      %p60 = scmp.eq.s32.totalorder %s15, 0
      %p61 = por %p59, %p60
      %p62 = scmp.ne.s32.totalorder %s51, %s54
      %p63 = scmp.eq.s32.totalorder %s20, 1
      %p64 = por %p62, %p63
      %p65 = scmp.ne.s32.totalorder %s54, %s55
      %p66 = scmp.eq.s32.totalorder %s20, 0
      %p67 = por %p65, %p66
      %p68 = scmp.ne.s32.totalorder %s54, %s55
      %p69 = scmp.eq.s32.totalorder %s21, 1
      %p70 = por %p68, %p69
      %p72 = scmp.ne.s32.totalorder %s55, %s71
      %p73 = scmp.eq.s32.totalorder %s21, 0
      %p74 = por %p72, %p73
      %s76 = sadd.s32 %s75, 1
      %p79 = scmp.eq.s32.totalorder %s15, 1
      %p80 = scmp.ne.s32.totalorder %s75, %s77
      %p81 = scmp.eq.s32.totalorder %s15, 0
      %p82 = por %p80, %p81
      %p83 = scmp.ne.s32.totalorder %s75, %s77
      %p84 = scmp.eq.s32.totalorder %s20, 1
      %p85 = por %p83, %p84
      %p86 = scmp.ne.s32.totalorder %s77, %s78
      %p87 = scmp.eq.s32.totalorder %s20, 0
      %p88 = por %p86, %p87
      %p89 = scmp.ne.s32.totalorder %s77, %s78
      %p90 = scmp.eq.s32.totalorder %s21, 1
      %p91 = por %p89, %p90
      %p93 = scmp.ne.s32.totalorder %s78, %s92
      %p94 = scmp.eq.s32.totalorder %s21, 0
      %p95 = por %p93, %p94
      %s97 = sadd.s32 %s96, 1
      %p100 = scmp.eq.s32.totalorder %s15, 1
      %p101 = scmp.ne.s32.totalorder %s96, %s98
      %p102 = scmp.eq.s32.totalorder %s15, 0
      %p103 = por %p101, %p102
      %p104 = scmp.ne.s32.totalorder %s96, %s98
      %p105 = scmp.eq.s32.totalorder %s20, 1
      %p106 = por %p104, %p105
      %p107 = scmp.ne.s32.totalorder %s98, %s99
      %p108 = scmp.eq.s32.totalorder %s20, 0
      %p109 = por %p107, %p108
      %p110 = scmp.ne.s32.totalorder %s98, %s99
      %p111 = scmp.eq.s32.totalorder %s21, 1
      %p112 = por %p110, %p111
      %p114 = scmp.ne.s32.totalorder %s99, %s113
      %p115 = scmp.eq.s32.totalorder %s21, 0
      %p116 = por %p114, %p115
      %s118 = sadd.s32 %s117, 1
      %p121 = scmp.eq.s32.totalorder %s15, 1
      %p122 = scmp.ne.s32.totalorder %s117, %s119
      %p123 = scmp.eq.s32.totalorder %s15, 0
      %p124 = por %p122, %p123
      %p125 = scmp.ne.s32.totalorder %s117, %s119
      %p126 = scmp.eq.s32.totalorder %s20, 1
      %p127 = por %p125, %p126
      %p128 = scmp.ne.s32.totalorder %s119, %s120
      %p129 = scmp.eq.s32.totalorder %s20, 0
      %p130 = por %p128, %p129
      %p131 = scmp.ne.s32.totalorder %s119, %s120
      %p132 = scmp.eq.s32.totalorder %s21, 1
      %p133 = por %p131, %p132
      %p135 = scmp.ne.s32.totalorder %s120, %s134
      %p136 = scmp.eq.s32.totalorder %s21, 0
      %p137 = por %p135, %p136
      %s139 = sadd.s32 %s138, 1
      %p142 = scmp.eq.s32.totalorder %s15, 1
      %p143 = scmp.ne.s32.totalorder %s138, %s140
      %p144 = scmp.eq.s32.totalorder %s15, 0
      %p145 = por %p143, %p144
      %p146 = scmp.ne.s32.totalorder %s138, %s140
      %p147 = scmp.eq.s32.totalorder %s20, 1
      %p148 = por %p146, %p147
      %p149 = scmp.ne.s32.totalorder %s140, %s141
      %p150 = scmp.eq.s32.totalorder %s20, 0
      %p151 = por %p149, %p150
      %p152 = scmp.ne.s32.totalorder %s140, %s141
      %p153 = scmp.eq.s32.totalorder %s21, 1
      %p154 = por %p152, %p153
      %p156 = scmp.ne.s32.totalorder %s141, %s155
      %p157 = scmp.eq.s32.totalorder %s21, 0
      %p158 = por %p156, %p157
      %s159 = ssub.s32 %s15, %s22
      %p160 = scmp.eq.s32.totalorder %s159, 0
      %s162 = sadd.s32 %s161, 1
      %s163 = scalar_select %p160, %s161, %s162
      %p166 = pneg %p160
      %p167 = scmp.eq.s32.totalorder %s15, 1
      %p168 = por %p166, %p167
      %p169 = scmp.ne.s32.totalorder %s161, %s164
      %p170 = scmp.eq.s32.totalorder %s15, 0
      %p171 = por %p169, %p170
      %p172 = scmp.ne.s32.totalorder %s161, %s164
      %p173 = scmp.eq.s32.totalorder %s20, 1
      %p174 = por %p172, %p173
      %p175 = scmp.ne.s32.totalorder %s164, %s165
      %p176 = scmp.eq.s32.totalorder %s20, 0
      %p177 = por %p175, %p176
      %p178 = scmp.ne.s32.totalorder %s164, %s165
      %p179 = scmp.eq.s32.totalorder %s21, 1
      %p180 = por %p178, %p179
      %p182 = scmp.ne.s32.totalorder %s165, %s181
      %p183 = scmp.eq.s32.totalorder %s21, 0
      %p184 = por %p182, %p183
      %p185 = scmp.le.s32.totalorder 1, %s15
      %p186 = scmp.lt.s32.totalorder %s15, 3
      %p187 = pnand %p185, %p186
      %p188 = pneg %p187
      // Predicated region
      $region9: #{tpu_custom_call.1} parent=5 // pred_check
        _
      $region10: #{tpu_custom_call.1} parent=5 // pred_check_branch
        %190 = sbr.rel (%p187) target = $region12
      $region11: #{tpu_custom_call.1} parent=5 // pred_region
        %s191 = ssub.s32 %s15, 1
        // Predicated region
        $region13: #{tpu_custom_call.1} parent=11 // pred_check
          %p192 = pneg %p88
        $region14: #{tpu_custom_call.1} parent=11 // pred_check_branch
          %194 = sbr.rel (%p192) target = $region16
        $region15: #{tpu_custom_call.1} parent=11 // pred_region
          _
        $region16: #{tpu_custom_call.1} parent=11 // pred_fallthru
          _
        // Predicated region
        $region17: #{tpu_custom_call.1} parent=11 // pred_check
          %p195 = pneg %p109
        $region18: #{tpu_custom_call.1} parent=11 // pred_check_branch
          %197 = sbr.rel (%p195) target = $region20
        $region19: #{tpu_custom_call.1} parent=11 // pred_region
          _
        $region20: #{tpu_custom_call.1} parent=11 // pred_fallthru
          _
        // Predicated region
        $region21: #{tpu_custom_call.1} parent=11 // pred_check
          %p198 = pneg %p130
        $region22: #{tpu_custom_call.1} parent=11 // pred_check_branch
          %200 = sbr.rel (%p198) target = $region24
        $region23: #{tpu_custom_call.1} parent=11 // pred_region
          _
        $region24: #{tpu_custom_call.1} parent=11 // pred_fallthru
          _
        // Predicated region
        $region25: #{tpu_custom_call.1} parent=11 // pred_check
          %p201 = pneg %p151
        $region26: #{tpu_custom_call.1} parent=11 // pred_check_branch
          %203 = sbr.rel (%p201) target = $region28
        $region27: #{tpu_custom_call.1} parent=11 // pred_region
          _
        $region28: #{tpu_custom_call.1} parent=11 // pred_fallthru
          _
      $region12: #{tpu_custom_call.1} parent=5 // pred_fallthru
        _
      %p204 = scmp.lt.s32.totalorder %s15, 2
      // Predicated region
      $region29: #{tpu_custom_call.1} parent=5 // pred_check
        %p205 = pneg %p204
      $region30: #{tpu_custom_call.1} parent=5 // pred_check_branch
        %207 = sbr.rel (%p205) target = $region32
      $region31: #{tpu_custom_call.1} parent=5 // pred_region
        // Predicated region
        $region33: #{tpu_custom_call.1} parent=31 // pred_check
          %p208 = pneg %p35
        $region34: #{tpu_custom_call.1} parent=31 // pred_check_branch
          %210 = sbr.rel (%p208) target = $region36
        $region35: #{tpu_custom_call.1} parent=31 // pred_region
          %p211 = scmp.lt.s32.totalorder %s15, 1
          %s212 = scalar_select %p211, %s15, 1
          %s213 = scalar_lea.vmem %s0, %s212
        $region36: #{tpu_custom_call.1} parent=31 // pred_fallthru
          _
        // Predicated region
        $region37: #{tpu_custom_call.1} parent=31 // pred_check
          %p214 = pneg %p61
        $region38: #{tpu_custom_call.1} parent=31 // pred_check_branch
          %216 = sbr.rel (%p214) target = $region40
        $region39: #{tpu_custom_call.1} parent=31 // pred_region
          %p217 = scmp.lt.s32.totalorder %s15, 1
          %s218 = scalar_select %p217, %s15, 1
          %s219 = scalar_lea.vmem %s1, %s218
        $region40: #{tpu_custom_call.1} parent=31 // pred_fallthru
          _
      $region32: #{tpu_custom_call.1} parent=5 // pred_fallthru
        _
      %p220 = scmp.le.s32.totalorder 1, %s15
      %p221 = scmp.lt.s32.totalorder %s15, 3
      %p222 = pnand %p220, %p221
      %p223 = pneg %p222
      // Predicated region
      $region41: #{tpu_custom_call.1} parent=5 // pred_check
        _
      $region42: #{tpu_custom_call.1} parent=5 // pred_check_branch
        %225 = sbr.rel (%p222) target = $region44
      $region43: #{tpu_custom_call.1} parent=5 // pred_region
        %s226 = ssub.s32 %s15, 1
        %p227 = scmp.lt.s32.totalorder %s20, 1
        %s228 = scalar_select %p227, %s20, 1
        %s229 = scalar_lea.vmem %s0, %s228
        %p230 = pneg %p41
        %p231 = pneg %p38
        %p232 = scmp.lt.s32.totalorder %s20, 1
        %s233 = scalar_select %p232, %s20, 1
        %s234 = scalar_lea.vmem %s1, %s233
        %p235 = pneg %p67
        %p236 = pneg %p64
        %p237 = pneg %p88
        %p238 = pneg %p85
        %p239 = pneg %p109
        %p240 = pneg %p106
        %p241 = pneg %p130
        %p242 = pneg %p127
        %p243 = pneg %p151
        %p244 = pneg %p148
        %p245 = pneg %p177
        %p246 = pneg %p174
        %s247 = sand.u32 %s164, 1
        %s248 = scalar_lea.sflag [#allocation3], %s247
        %s249 = sand.u32 %s164, 1
        %s250 = smul.addr %s249, 4
        %s251 = scalar_lea.vmem [#allocation2], %s250
        %p252 = scmp.lt.s32.totalorder %s20, 1
        %s253 = scalar_select %p252, %s20, 1
        %s254 = scalar_lea.vmem %s0, %s253
        %p255 = scmp.lt.s32.totalorder %s20, 1
        %s256 = scalar_select %p255, %s20, 1
        %s257 = scalar_lea.vmem %s1, %s256
        %v258 = vlaneseq
        %v259 = vshrl.u32 %v258, 7
        %v260 = vadd.s32 %v259, 8
        %v261 = vadd.s32 %v259, 16
        %v262 = vadd.s32 %v259, 24
        %v263 = vadd.s32 %v259, 32
        %v264 = vadd.s32 %v259, 40
        %v265 = vadd.s32 %v259, 48
        %v266 = vadd.s32 %v259, 56
        %v267 = vadd.s32 %v259, 64
        %v268 = vadd.s32 %v259, 72
        %v269 = vadd.s32 %v259, 80
        %v270 = vadd.s32 %v259, 88
        %v271 = vadd.s32 %v259, 96
        %v272 = vadd.s32 %v259, 104
        %v273 = vadd.s32 %v259, 112
        %v274 = vadd.s32 %v259, 120
        %v275 = vld [vmem:[%s254] sm:$0x1]
        %v276 = vlaneseq
        %v277 = vshrl.u32 %v276, 7
        %v278 = vsub.s32 0, %v277
        %v279 = vrot.slane %v275, %v278
        %vm280 = vcmp.eq.s32.totalorder %v259, %v279
        %vm281 = vcmp.eq.s32.totalorder %v260, %v279
        %vm282 = vcmp.eq.s32.totalorder %v261, %v279
        %vm283 = vcmp.eq.s32.totalorder %v262, %v279
        %vm284 = vcmp.eq.s32.totalorder %v263, %v279
        %vm285 = vcmp.eq.s32.totalorder %v264, %v279
        %vm286 = vcmp.eq.s32.totalorder %v265, %v279
        %vm287 = vcmp.eq.s32.totalorder %v266, %v279
        %vm288 = vcmp.eq.s32.totalorder %v267, %v279
        %vm289 = vcmp.eq.s32.totalorder %v268, %v279
        %vm290 = vcmp.eq.s32.totalorder %v269, %v279
        %vm291 = vcmp.eq.s32.totalorder %v270, %v279
        %vm292 = vcmp.eq.s32.totalorder %v271, %v279
        %vm293 = vcmp.eq.s32.totalorder %v272, %v279
        %vm294 = vcmp.eq.s32.totalorder %v273, %v279
        %vm295 = vcmp.eq.s32.totalorder %v274, %v279
        %v296 = vsel %vm280, 1, 0
        %v297 = vsel %vm281, 1, 0
        %v298 = vsel %vm282, 1, 0
        %v299 = vsel %vm283, 1, 0
        %v300 = vsel %vm284, 1, 0
        %v301 = vsel %vm285, 1, 0
        %v302 = vsel %vm286, 1, 0
        %v303 = vsel %vm287, 1, 0
        %v304 = vsel %vm288, 1, 0
        %v305 = vsel %vm289, 1, 0
        %v306 = vsel %vm290, 1, 0
        %v307 = vsel %vm291, 1, 0
        %v308 = vsel %vm292, 1, 0
        %v309 = vsel %vm293, 1, 0
        %v310 = vsel %vm294, 1, 0
        %v311 = vsel %vm295, 1, 0
        %v312 = vcvt.s32.f32 %v296
        %v313 = vcvt.s32.f32 %v297
        %v314 = vcvt.s32.f32 %v298
        %v315 = vcvt.s32.f32 %v299
        %v316 = vcvt.s32.f32 %v300
        %v317 = vcvt.s32.f32 %v301
        %v318 = vcvt.s32.f32 %v302
        %v319 = vcvt.s32.f32 %v303
        %v320 = vcvt.s32.f32 %v304
        %v321 = vcvt.s32.f32 %v305
        %v322 = vcvt.s32.f32 %v306
        %v323 = vcvt.s32.f32 %v307
        %v324 = vcvt.s32.f32 %v308
        %v325 = vcvt.s32.f32 %v309
        %v326 = vcvt.s32.f32 %v310
        %v327 = vcvt.s32.f32 %v311
        %v328 = vld [vmem:[%s257] sm:$0x1]
        %v329 = vlaneseq
        %v330 = vshrl.u32 %v329, 7
        %v331 = vsub.s32 0, %v330
        %v332 = vrot.slane %v328, %v331
        %vm333 = vcmp.eq.s32.totalorder %v259, %v332
        %vm334 = vcmp.eq.s32.totalorder %v260, %v332
        %vm335 = vcmp.eq.s32.totalorder %v261, %v332
        %vm336 = vcmp.eq.s32.totalorder %v262, %v332
        %vm337 = vcmp.eq.s32.totalorder %v263, %v332
        %vm338 = vcmp.eq.s32.totalorder %v264, %v332
        %vm339 = vcmp.eq.s32.totalorder %v265, %v332
        %vm340 = vcmp.eq.s32.totalorder %v266, %v332
        %vm341 = vcmp.eq.s32.totalorder %v267, %v332
        %vm342 = vcmp.eq.s32.totalorder %v268, %v332
        %vm343 = vcmp.eq.s32.totalorder %v269, %v332
        %vm344 = vcmp.eq.s32.totalorder %v270, %v332
        %vm345 = vcmp.eq.s32.totalorder %v271, %v332
        %vm346 = vcmp.eq.s32.totalorder %v272, %v332
        %vm347 = vcmp.eq.s32.totalorder %v273, %v332
        %vm348 = vcmp.eq.s32.totalorder %v274, %v332
        %v349 = vsel %vm333, 1, 0
        %v350 = vsel %vm334, 1, 0
        %v351 = vsel %vm335, 1, 0
        %v352 = vsel %vm336, 1, 0
        %v353 = vsel %vm337, 1, 0
        %v354 = vsel %vm338, 1, 0
        %v355 = vsel %vm339, 1, 0
        %v356 = vsel %vm340, 1, 0
        %v357 = vsel %vm341, 1, 0
        %v358 = vsel %vm342, 1, 0
        %v359 = vsel %vm343, 1, 0
        %v360 = vsel %vm344, 1, 0
        %v361 = vsel %vm345, 1, 0
        %v362 = vsel %vm346, 1, 0
        %v363 = vsel %vm347, 1, 0
        %v364 = vsel %vm348, 1, 0
        %v365 = vcvt.s32.f32 %v349
        %v366 = vcvt.s32.f32 %v350
        %v367 = vcvt.s32.f32 %v351
        %v368 = vcvt.s32.f32 %v352
        %v369 = vcvt.s32.f32 %v353
        %v370 = vcvt.s32.f32 %v354
        %v371 = vcvt.s32.f32 %v355
        %v372 = vcvt.s32.f32 %v356
        %v373 = vcvt.s32.f32 %v357
        %v374 = vcvt.s32.f32 %v358
        %v375 = vcvt.s32.f32 %v359
        %v376 = vcvt.s32.f32 %v360
        %v377 = vcvt.s32.f32 %v361
        %v378 = vcvt.s32.f32 %v362
        %v379 = vcvt.s32.f32 %v363
        %v380 = vcvt.s32.f32 %v364
        %v381 = vld [vmem:[%s2] sm:$0xff]
        %v382 = vld [vmem:[%s2 + $0x8] sm:$0xff]
        %v383 = vld [vmem:[%s2 + $0x10] sm:$0xff]
        %v384 = vld [vmem:[%s2 + $0x18] sm:$0xff]
        %v385 = vld [vmem:[%s2 + $0x20] sm:$0xff]
        %v386 = vld [vmem:[%s2 + $0x28] sm:$0xff]
        %v387 = vld [vmem:[%s2 + $0x30] sm:$0xff]
        %v388 = vld [vmem:[%s2 + $0x38] sm:$0xff]
        %v389 = vld [vmem:[%s2 + $0x40] sm:$0xff]
        %v390 = vld [vmem:[%s2 + $0x48] sm:$0xff]
        %v391 = vld [vmem:[%s2 + $0x50] sm:$0xff]
        %v392 = vld [vmem:[%s2 + $0x58] sm:$0xff]
        %v393 = vld [vmem:[%s2 + $0x60] sm:$0xff]
        %v394 = vld [vmem:[%s2 + $0x68] sm:$0xff]
        %v395 = vld [vmem:[%s2 + $0x70] sm:$0xff]
        %v396 = vld [vmem:[%s2 + $0x78] sm:$0xff]
        %397 = vxpose.xlu0.b32.start [1/16] %v381, 128
        %398 = vxpose.xlu0.b32.cont [2/16] %v382, 128
        %399 = vxpose.xlu0.b32.cont [3/16] %v383, 128
        %400 = vxpose.xlu0.b32.cont [4/16] %v384, 128
        %401 = vxpose.xlu0.b32.cont [5/16] %v385, 128
        %402 = vxpose.xlu0.b32.cont [6/16] %v386, 128
        %403 = vxpose.xlu0.b32.cont [7/16] %v387, 128
        %404 = vxpose.xlu0.b32.cont [8/16] %v388, 128
        %405 = vxpose.xlu0.b32.cont [9/16] %v389, 128
        %406 = vxpose.xlu0.b32.cont [10/16] %v390, 128
        %407 = vxpose.xlu0.b32.cont [11/16] %v391, 128
        %408 = vxpose.xlu0.b32.cont [12/16] %v392, 128
        %409 = vxpose.xlu0.b32.cont [13/16] %v393, 128
        %410 = vxpose.xlu0.b32.cont [14/16] %v394, 128
        %411 = vxpose.xlu0.b32.cont [15/16] %v395, 128
        %412 = vxpose.xlu0.b32.end [16/16] %v396, 128
        %v413 = vpop.trf.xlu0
        %v414 = vpop.trf.xlu0
        %v415 = vpop.trf.xlu0
        %v416 = vpop.trf.xlu0
        %v417 = vpop.trf.xlu0
        %v418 = vpop.trf.xlu0
        %v419 = vpop.trf.xlu0
        %v420 = vpop.trf.xlu0
        %v421 = vpop.trf.xlu0
        %v422 = vpop.trf.xlu0
        %v423 = vpop.trf.xlu0
        %v424 = vpop.trf.xlu0
        %v425 = vpop.trf.xlu0
        %v426 = vpop.trf.xlu0
        %v427 = vpop.trf.xlu0
        %v428 = vpop.trf.xlu0
        %429 = vmatprep.subr.mxu0 0.0
        %430 = vmatpush1.msra.mxu0 %v327
        %431 = vmatprep.subr.mxu0 0.0
        %432 = vmatpush1.msra.mxu0 %v326
        %433 = vmatprep.subr.mxu0 0.0
        %434 = vmatpush1.msra.mxu0 %v325
        %435 = vmatprep.subr.mxu0 0.0
        %436 = vmatpush1.msra.mxu0 %v324
        %437 = vmatprep.subr.mxu0 0.0
        %438 = vmatpush1.msra.mxu0 %v323
        %439 = vmatprep.subr.mxu0 0.0
        %440 = vmatpush1.msra.mxu0 %v322
        %441 = vmatprep.subr.mxu0 0.0
        %442 = vmatpush1.msra.mxu0 %v321
        %443 = vmatprep.subr.mxu0 0.0
        %444 = vmatpush1.msra.mxu0 %v320
        %445 = vmatprep.subr.mxu0 0.0
        %446 = vmatpush1.msra.mxu0 %v319
        %447 = vmatprep.subr.mxu0 0.0
        %448 = vmatpush1.msra.mxu0 %v318
        %449 = vmatprep.subr.mxu0 0.0
        %450 = vmatpush1.msra.mxu0 %v317
        %451 = vmatprep.subr.mxu0 0.0
        %452 = vmatpush1.msra.mxu0 %v316
        %453 = vmatprep.subr.mxu0 0.0
        %454 = vmatpush1.msra.mxu0 %v315
        %455 = vmatprep.subr.mxu0 0.0
        %456 = vmatpush1.msra.mxu0 %v314
        %457 = vmatprep.subr.mxu0 0.0
        %458 = vmatpush1.msra.mxu0 %v313
        %459 = vmatprep.subr.mxu0 0.0
        %460 = vmatpush1.msra.mxu0 %v312
        %461 = vmatprep.subr.mxu0 0.0
        %462 = vmatpush2.msra.mxu0 0.0
        %463 = vmatprep.subr.mxu0 0.0
        %464 = vmatpush2.msra.mxu0 0.0
        %465 = vmatprep.subr.mxu0 0.0
        %466 = vmatpush2.msra.mxu0 0.0
        %467 = vmatprep.subr.mxu0 0.0
        %468 = vmatpush2.msra.mxu0 0.0
        %469 = vmatprep.subr.mxu0 0.0
        %470 = vmatpush2.msra.mxu0 0.0
        %471 = vmatprep.subr.mxu0 0.0
        %472 = vmatpush2.msra.mxu0 0.0
        %473 = vmatprep.subr.mxu0 0.0
        %474 = vmatpush2.msra.mxu0 0.0
        %475 = vmatprep.subr.mxu0 0.0
        %476 = vmatpush2.msra.mxu0 0.0
        %477 = vmatprep.subr.mxu0 0.0
        %478 = vmatpush2.msra.mxu0 0.0
        %479 = vmatprep.subr.mxu0 0.0
        %480 = vmatpush2.msra.mxu0 0.0
        %481 = vmatprep.subr.mxu0 0.0
        %482 = vmatpush2.msra.mxu0 0.0
        %483 = vmatprep.subr.mxu0 0.0
        %484 = vmatpush2.msra.mxu0 0.0
        %485 = vmatprep.subr.mxu0 0.0
        %486 = vmatpush2.msra.mxu0 0.0
        %487 = vmatprep.subr.mxu0 0.0
        %488 = vmatpush2.msra.mxu0 0.0
        %489 = vmatprep.subr.mxu0 0.0
        %490 = vmatpush2.msra.mxu0 0.0
        %491 = vmatprep.subr.mxu0 0.0
        %492 = vmatpush2.msra.mxu0 0.0
        %493 = vmatprep.mubr.f32.mxu0 0.0
        %494 = vmatmul.mubr.f32.gmra.mxu0 %v413
        %v495 = vpop.f32.mrf.mxu0
        %v496 = vadd.f32 0.0, %v495
        %v497 = vpop.f32.mrf.mxu0
        %498 = vmatprep.mubr.f32.mxu0 0.0
        %499 = vmatmul.mubr.f32.gmra.mxu0 %v414
        %v500 = vpop.f32.mrf.mxu0
        %v501 = vadd.f32 0.0, %v500
        %v502 = vpop.f32.mrf.mxu0
        %503 = vmatprep.mubr.f32.mxu0 0.0
        %504 = vmatmul.mubr.f32.gmra.mxu0 %v415
        %v505 = vpop.f32.mrf.mxu0
        %v506 = vadd.f32 0.0, %v505
        %v507 = vpop.f32.mrf.mxu0
        %508 = vmatprep.mubr.f32.mxu0 0.0
        %509 = vmatmul.mubr.f32.gmra.mxu0 %v416
        %v510 = vpop.f32.mrf.mxu0
        %v511 = vadd.f32 0.0, %v510
        %v512 = vpop.f32.mrf.mxu0
        %513 = vdwg.mxu0
        %v514 = vld [vmem:[%s3] sm:$0xff]
        %v515 = vld [vmem:[%s3 + $0x8] sm:$0xff]
        %v516 = vld [vmem:[%s3 + $0x10] sm:$0xff]
        %v517 = vld [vmem:[%s3 + $0x18] sm:$0xff]
        %v518 = vld [vmem:[%s3 + $0x20] sm:$0xff]
        %v519 = vld [vmem:[%s3 + $0x28] sm:$0xff]
        %v520 = vld [vmem:[%s3 + $0x30] sm:$0xff]
        %v521 = vld [vmem:[%s3 + $0x38] sm:$0xff]
        %v522 = vld [vmem:[%s3 + $0x40] sm:$0xff]
        %v523 = vld [vmem:[%s3 + $0x48] sm:$0xff]
        %v524 = vld [vmem:[%s3 + $0x50] sm:$0xff]
        %v525 = vld [vmem:[%s3 + $0x58] sm:$0xff]
        %v526 = vld [vmem:[%s3 + $0x60] sm:$0xff]
        %v527 = vld [vmem:[%s3 + $0x68] sm:$0xff]
        %v528 = vld [vmem:[%s3 + $0x70] sm:$0xff]
        %v529 = vld [vmem:[%s3 + $0x78] sm:$0xff]
        %530 = vxpose.xlu0.b32.start [1/16] %v514, 128
        %531 = vxpose.xlu0.b32.cont [2/16] %v515, 128
        %532 = vxpose.xlu0.b32.cont [3/16] %v516, 128
        %533 = vxpose.xlu0.b32.cont [4/16] %v517, 128
        %534 = vxpose.xlu0.b32.cont [5/16] %v518, 128
        %535 = vxpose.xlu0.b32.cont [6/16] %v519, 128
        %536 = vxpose.xlu0.b32.cont [7/16] %v520, 128
        %537 = vxpose.xlu0.b32.cont [8/16] %v521, 128
        %538 = vxpose.xlu0.b32.cont [9/16] %v522, 128
        %539 = vxpose.xlu0.b32.cont [10/16] %v523, 128
        %540 = vxpose.xlu0.b32.cont [11/16] %v524, 128
        %541 = vxpose.xlu0.b32.cont [12/16] %v525, 128
        %542 = vxpose.xlu0.b32.cont [13/16] %v526, 128
        %543 = vxpose.xlu0.b32.cont [14/16] %v527, 128
        %544 = vxpose.xlu0.b32.cont [15/16] %v528, 128
        %545 = vxpose.xlu0.b32.end [16/16] %v529, 128
        %v546 = vpop.trf.xlu0
        %v547 = vpop.trf.xlu0
        %v548 = vpop.trf.xlu0
        %v549 = vpop.trf.xlu0
        %v550 = vpop.trf.xlu0
        %v551 = vpop.trf.xlu0
        %v552 = vpop.trf.xlu0
        %v553 = vpop.trf.xlu0
        %v554 = vpop.trf.xlu0
        %v555 = vpop.trf.xlu0
        %v556 = vpop.trf.xlu0
        %v557 = vpop.trf.xlu0
        %v558 = vpop.trf.xlu0
        %v559 = vpop.trf.xlu0
        %v560 = vpop.trf.xlu0
        %v561 = vpop.trf.xlu0
        %562 = vmatprep.subr.mxu0 0.0
        %563 = vmatpush1.msra.mxu0 %v380
        %564 = vmatprep.subr.mxu0 0.0
        %565 = vmatpush1.msra.mxu0 %v379
        %566 = vmatprep.subr.mxu0 0.0
        %567 = vmatpush1.msra.mxu0 %v378
        %568 = vmatprep.subr.mxu0 0.0
        %569 = vmatpush1.msra.mxu0 %v377
        %570 = vmatprep.subr.mxu0 0.0
        %571 = vmatpush1.msra.mxu0 %v376
        %572 = vmatprep.subr.mxu0 0.0
        %573 = vmatpush1.msra.mxu0 %v375
        %574 = vmatprep.subr.mxu0 0.0
        %575 = vmatpush1.msra.mxu0 %v374
        %576 = vmatprep.subr.mxu0 0.0
        %577 = vmatpush1.msra.mxu0 %v373
        %578 = vmatprep.subr.mxu0 0.0
        %579 = vmatpush1.msra.mxu0 %v372
        %580 = vmatprep.subr.mxu0 0.0
        %581 = vmatpush1.msra.mxu0 %v371
        %582 = vmatprep.subr.mxu0 0.0
        %583 = vmatpush1.msra.mxu0 %v370
        %584 = vmatprep.subr.mxu0 0.0
        %585 = vmatpush1.msra.mxu0 %v369
        %586 = vmatprep.subr.mxu0 0.0
        %587 = vmatpush1.msra.mxu0 %v368
        %588 = vmatprep.subr.mxu0 0.0
        %589 = vmatpush1.msra.mxu0 %v367
        %590 = vmatprep.subr.mxu0 0.0
        %591 = vmatpush1.msra.mxu0 %v366
        %592 = vmatprep.subr.mxu0 0.0
        %593 = vmatpush1.msra.mxu0 %v365
        %594 = vmatprep.subr.mxu0 0.0
        %595 = vmatpush2.msra.mxu0 0.0
        %596 = vmatprep.subr.mxu0 0.0
        %597 = vmatpush2.msra.mxu0 0.0
        %598 = vmatprep.subr.mxu0 0.0
        %599 = vmatpush2.msra.mxu0 0.0
        %600 = vmatprep.subr.mxu0 0.0
        %601 = vmatpush2.msra.mxu0 0.0
        %602 = vmatprep.subr.mxu0 0.0
        %603 = vmatpush2.msra.mxu0 0.0
        %604 = vmatprep.subr.mxu0 0.0
        %605 = vmatpush2.msra.mxu0 0.0
        %606 = vmatprep.subr.mxu0 0.0
        %607 = vmatpush2.msra.mxu0 0.0
        %608 = vmatprep.subr.mxu0 0.0
        %609 = vmatpush2.msra.mxu0 0.0
        %610 = vmatprep.subr.mxu0 0.0
        %611 = vmatpush2.msra.mxu0 0.0
        %612 = vmatprep.subr.mxu0 0.0
        %613 = vmatpush2.msra.mxu0 0.0
        %614 = vmatprep.subr.mxu0 0.0
        %615 = vmatpush2.msra.mxu0 0.0
        %616 = vmatprep.subr.mxu0 0.0
        %617 = vmatpush2.msra.mxu0 0.0
        %618 = vmatprep.subr.mxu0 0.0
        %619 = vmatpush2.msra.mxu0 0.0
        %620 = vmatprep.subr.mxu0 0.0
        %621 = vmatpush2.msra.mxu0 0.0
        %622 = vmatprep.subr.mxu0 0.0
        %623 = vmatpush2.msra.mxu0 0.0
        %624 = vmatprep.subr.mxu0 0.0
        %625 = vmatpush2.msra.mxu0 0.0
        %626 = vmatprep.mubr.f32.mxu0 0.0
        %627 = vmatmul.mubr.f32.gmra.mxu0 %v546
        %v628 = vpop.f32.mrf.mxu0
        %v629 = vadd.f32 0.0, %v628
        %v630 = vpop.f32.mrf.mxu0
        %631 = vmatprep.mubr.f32.mxu0 0.0
        %632 = vmatmul.mubr.f32.gmra.mxu0 %v547
        %v633 = vpop.f32.mrf.mxu0
        %v634 = vadd.f32 0.0, %v633
        %v635 = vpop.f32.mrf.mxu0
        %636 = vmatprep.mubr.f32.mxu0 0.0
        %637 = vmatmul.mubr.f32.gmra.mxu0 %v548
        %v638 = vpop.f32.mrf.mxu0
        %v639 = vadd.f32 0.0, %v638
        %v640 = vpop.f32.mrf.mxu0
        %641 = vmatprep.mubr.f32.mxu0 0.0
        %642 = vmatmul.mubr.f32.gmra.mxu0 %v549
        %v643 = vpop.f32.mrf.mxu0
        %v644 = vadd.f32 0.0, %v643
        %v645 = vpop.f32.mrf.mxu0
        %646 = vdwg.mxu0
        %v647 = vmul.f32 %v496, %v629
        %v648 = vmul.f32 %v501, %v634
        %v649 = vmul.f32 %v506, %v639
        %v650 = vmul.f32 %v511, %v644
        %v651 = vld [vmem:[%s4] sm:$0x3]
        %v652 = vld [vmem:[%s5] sm:$0x3]
        %654 = vset.pattern.permute.xlu0 0
        %655 = vperm.xlu0 %654, %v652
        %v656 = vpop.permute.xlu0 %655
        %vm658 = vcmask 261120
        %v660 = vsel %vm658, %v651, 0
        %662 = vmatprep.subr.mxu0 0.0
        %663 = vmatpush1.msra.mxu0 0.0
        %664 = vmatprep.subr.mxu0 0.0
        %665 = vmatpush1.msra.mxu0 0.0
        %666 = vmatprep.subr.mxu0 0.0
        %667 = vmatpush1.msra.mxu0 0.0
        %668 = vmatprep.subr.mxu0 0.0
        %669 = vmatpush1.msra.mxu0 0.0
        %670 = vmatprep.subr.mxu0 0.0
        %671 = vmatpush1.msra.mxu0 0.0
        %672 = vmatprep.subr.mxu0 0.0
        %673 = vmatpush1.msra.mxu0 0.0
        %674 = vmatprep.subr.mxu0 0.0
        %675 = vmatpush1.msra.mxu0 0.0
        %676 = vmatprep.subr.mxu0 0.0
        %677 = vmatpush1.msra.mxu0 0.0
        %678 = vmatprep.subr.mxu0 0.0
        %679 = vmatpush1.msra.mxu0 0.0
        %680 = vmatprep.subr.mxu0 0.0
        %681 = vmatpush1.msra.mxu0 0.0
        %682 = vmatprep.subr.mxu0 0.0
        %683 = vmatpush1.msra.mxu0 0.0
        %684 = vmatprep.subr.mxu0 0.0
        %685 = vmatpush1.msra.mxu0 0.0
        %686 = vmatprep.subr.mxu0 0.0
        %687 = vmatpush1.msra.mxu0 %v650
        %688 = vmatprep.subr.mxu0 0.0
        %689 = vmatpush1.msra.mxu0 %v649
        %690 = vmatprep.subr.mxu0 0.0
        %691 = vmatpush1.msra.mxu0 %v648
        %692 = vmatprep.subr.mxu0 0.0
        %693 = vmatpush1.msra.mxu0 %v647
        %694 = vmatprep.subr.mxu0 0.0
        %695 = vmatpush2.msra.mxu0 0.0
        %696 = vmatprep.subr.mxu0 0.0
        %697 = vmatpush2.msra.mxu0 0.0
        %698 = vmatprep.subr.mxu0 0.0
        %699 = vmatpush2.msra.mxu0 0.0
        %700 = vmatprep.subr.mxu0 0.0
        %701 = vmatpush2.msra.mxu0 0.0
        %702 = vmatprep.subr.mxu0 0.0
        %703 = vmatpush2.msra.mxu0 0.0
        %704 = vmatprep.subr.mxu0 0.0
        %705 = vmatpush2.msra.mxu0 0.0
        %706 = vmatprep.subr.mxu0 0.0
        %707 = vmatpush2.msra.mxu0 0.0
        %708 = vmatprep.subr.mxu0 0.0
        %709 = vmatpush2.msra.mxu0 0.0
        %710 = vmatprep.subr.mxu0 0.0
        %711 = vmatpush2.msra.mxu0 0.0
        %712 = vmatprep.subr.mxu0 0.0
        %713 = vmatpush2.msra.mxu0 0.0
        %714 = vmatprep.subr.mxu0 0.0
        %715 = vmatpush2.msra.mxu0 0.0
        %716 = vmatprep.subr.mxu0 0.0
        %717 = vmatpush2.msra.mxu0 0.0
        %718 = vmatprep.subr.mxu0 0.0
        %719 = vmatpush2.msra.mxu0 0.0
        %720 = vmatprep.subr.mxu0 0.0
        %721 = vmatpush2.msra.mxu0 0.0
        %722 = vmatprep.subr.mxu0 0.0
        %723 = vmatpush2.msra.mxu0 0.0
        %724 = vmatprep.subr.mxu0 0.0
        %725 = vmatpush2.msra.mxu0 0.0
        %726 = vmatprep.mubr.f32.mxu0 0.0
        %727 = vmatmul.mubr.f32.gmra.mxu0 %v660
        %v728 = vpop.f32.mrf.mxu0
        %v729 = vadd.f32 %v656, %v728
        %v730 = vpop.f32.mrf.mxu0
        %731 = vdwg.mxu0
        %v732 = vmul.f32 %v729, 0.5
        %v733 = vmul.f32 %v732, 1.442695
        %v734 = vpow.pop %v733
        %v736 = vrot.slane %v729, 7
        %vm738 = vcmask 1040384
        %v739 = vsel %vm738, %v729, %v734
        %vm740 = vcmask 1041408
        %v741 = vsel %vm740, %v739, %v736
        %742 = vst [vmem:[%s251] sm:$0x7] %v741
        %s743 = sand.u32 %s164, 1
        %s744 = scalar_lea.sflag [#allocation3], %s743
        %s745 = sand.u32 %s164, 1
        %s746 = smul.addr %s745, 4
        %s747 = scalar_lea.vmem [#allocation2], %s746
        // Predicated region
        $region45: #{tpu_custom_call.1} parent=43 // pred_check
          %p748 = pneg %p174
        $region46: #{tpu_custom_call.1} parent=43 // pred_check_branch
          %750 = sbr.rel (%p748) target = $region48
        $region47: #{tpu_custom_call.1} parent=43 // pred_region
          %s752 = ssub.s32 64, 64
          %753 = vsyncadd %s744, %s752
          %s754 = smul.addr %s20, 64
          %s755 = scalar_lea.hbm %s6, %s754
          %s757 = sshll.u32 %s747, 4
          %s758 = int_to_ptr.vmem [resolvable:$true] %s757
          %760 = dma.vmem_to_hbm [thread:$0]  %s758, 64, %s755, %s744
        $region48: #{tpu_custom_call.1} parent=43 // pred_fallthru
          _
      $region44: #{tpu_custom_call.1} parent=5 // pred_fallthru
        _
      %p761 = scmp.le.s32.totalorder 2, %s15
      // Predicated region
      $region49: #{tpu_custom_call.1} parent=5 // pred_check
        %p762 = pneg %p761
      $region50: #{tpu_custom_call.1} parent=5 // pred_check_branch
        %764 = sbr.rel (%p762) target = $region52
      $region51: #{tpu_custom_call.1} parent=5 // pred_region
        %s765 = ssub.s32 %s15, 2
        // Predicated region
        $region53: #{tpu_custom_call.1} parent=51 // pred_check
          %p766 = pneg %p180
        $region54: #{tpu_custom_call.1} parent=51 // pred_check_branch
          %768 = sbr.rel (%p766) target = $region56
        $region55: #{tpu_custom_call.1} parent=51 // pred_region
          %s769 = sand.u32 %s165, 1
          %s770 = scalar_lea.sflag [#allocation3], %s769
          %s771 = sand.u32 %s165, 1
          %s772 = smul.addr %s771, 4
          %s773 = scalar_lea.vmem [#allocation2], %s772
          %774 = dma.done %s770, 64
        $region56: #{tpu_custom_call.1} parent=51 // pred_fallthru
          _
      $region52: #{tpu_custom_call.1} parent=5 // pred_fallthru
        _
    $region6: #{tpu_custom_call.1} parent=1 // loop_footer
      %s19 = sadd.s32 1, %s15
    $region7: #{tpu_custom_call.1} parent=1 // loop_footer_branch
      %14 = sbr.rel target = $region3
    $region8: #{tpu_custom_call.1} parent=1 // loop_exit
      _
    %775 = vsyncpa [#allocation3], 1
    %s776 = scalar_lea.sflag [#allocation3], 1
    %777 = vsyncpa %s776, 1

</llo_original>
